<compile_context>
chip_gen: v6e
topology: v6e:2x2x1
jax: 0.10.0
libtpu: 0.0.40
codegen_flags: <defaults>
</compile_context>

<pallas_src>
import jax
import jax.numpy as jnp
from jax import lax
from jax.experimental import pallas as pl
from jax.experimental.pallas import tpu as pltpu

H_SIZE = 32                  # h_size (context-vector feature dim)
D0, D1, D_OUT = 300, 200, 1  # logical nn.Linear sizes
D0_PAD = 384                 # fc_0 output dim padded to a lane multiple
TM_MAX = 1024                # max batch columns per grid step


def decoder_kernel(xT_ref, w0t_ref, b0_ref, wf_ref, c_ref, o_ref):
    """One M-tile: fc_0 on the MXU, folded fc_1∘fc_out as a VPU weighted reduce."""
    xT = xT_ref[...].astype(jnp.float32)                    # (H, tm), M on lanes
    h0 = jnp.dot(w0t_ref[...], xT,
                 preferred_element_type=jnp.float32)        # (384, tm) fp32
    h0 = h0 + b0_ref[...]                                   # (384,1) bcast over lanes
    # Folded fc_1∘fc_out: weighted sublane reduction -> (1, tm), lane-dense.
    out = jnp.sum(h0 * wf_ref[...], axis=0, keepdims=True) + c_ref[...]
    # Replicate over 8 sublanes so the store is a full, unmasked vreg write.
    o_ref[...] = jnp.broadcast_to(out, o_ref.shape)


def _round_up(x, n):
    return ((x + n - 1) // n) * n


def decoder_apply(x2d, packed):
    """Batched decoder: x2d (M, H_SIZE) -> (M, 1) fp32.

    x is transposed wrapper-side so M rides the lane axis end-to-end.  Weight /
    bias specs use constant index_maps so they are DMA'd once and stay
    VMEM-resident across the M grid; the M axis is 'parallel' (megacore-shardable
    on v7x when grid_m >= 2).  Accepts bf16 x directly (cast happens in-kernel).
    """
    w0t, b0c, wfc, cc = packed
    m = x2d.shape[0]

    # Pad M to a lane multiple; pick tm so large batches use >= 2 grid steps
    # (both v7x TensorCores), capped at TM_MAX to amortize per-step overhead.
    m_pad = _round_up(m, 128)
    tm = min(TM_MAX, max(128, _round_up(m_pad // 2, 128)))
    m_pad = _round_up(m_pad, tm)
    grid_m = m_pad // tm

    xT = jnp.pad(x2d.T, ((0, 0), (0, m_pad - m)))   # (H, m_pad): one cheap transpose

    const = lambda i: (0, 0)                        # weights: same block every step
    flops = 2 * m_pad * H_SIZE * D0_PAD + 3 * m_pad * D0_PAD
    bytes_accessed = (xT.size * xT.dtype.itemsize + w0t.size * 4 + b0c.size * 4
                      + wfc.size * 4 + cc.size * 4 + 8 * m_pad * 4)

    out = pl.pallas_call(
        decoder_kernel,
        out_shape=jax.ShapeDtypeStruct((8, m_pad), jnp.float32),
        grid_spec=pltpu.PrefetchScalarGridSpec(
            num_scalar_prefetch=0,
            grid=(grid_m,),
            in_specs=[
                pl.BlockSpec((H_SIZE, tm), lambda i: (0, i)),   # x tile (M on lanes)
                pl.BlockSpec((D0_PAD, H_SIZE), const),          # W0^T (f32, resident)
                pl.BlockSpec((D0_PAD, 1), const),               # b0 column
                pl.BlockSpec((D0_PAD, 1), const),               # folded W1@W2 column
                pl.BlockSpec((1, 1), const),                    # folded bias scalar
            ],
            out_specs=pl.BlockSpec((8, tm), lambda i: (0, i)),  # lane-dense out row
        ),
        compiler_params=pltpu.CompilerParams(
            dimension_semantics=("parallel",)),
        cost_estimate=pl.CostEstimate(
            flops=int(flops), transcendentals=0,
            bytes_accessed=int(bytes_accessed)),
    )(xT, w0t, b0c, wfc, cc)
    return out[0, :m].reshape(m, 1)


def decoder_forward(ctx_vec, packed):
    """Exact PyTorch forward: ctx_vec (1, 1, h_size) -> prediction of shape (1,)."""
    # TODO(synk): in a real autoregressive decode loop, batch steps through
    # decoder_apply, fuse this head into the upstream attention/RNN-cell kernel, or
    # keep weights VMEM-resident via a cross-pallas_call prefetch, instead of paying
    # a per-token pallas_call launch + weight DMA.
    x2d = ctx_vec.reshape(1, ctx_vec.shape[-1])
    out = decoder_apply(x2d, packed)              # (1, 1)
    return out.reshape(D_OUT)                     # squeeze(0).squeeze(0) -> (1,)


def init_params(key, h_size):
    """nn.Linear-like init U(-1/sqrt(fan_in), 1/sqrt(fan_in)); weights as (in, out)."""
    ks = jax.random.split(key, 6)

    def lin(kw, kb, fan_in, fan_out):
        bound = 1.0 / jnp.sqrt(jnp.float32(fan_in))
        w = jax.random.uniform(kw, (fan_in, fan_out), jnp.float32, -bound, bound)
        b = jax.random.uniform(kb, (fan_out,), jnp.float32, -bound, bound)
        return w, b

    w0, b0 = lin(ks[0], ks[1], h_size, D0)
    w1, b1 = lin(ks[2], ks[3], D0, D1)
    w2, b2 = lin(ks[4], ks[5], D1, D_OUT)
    return (w0, b0, w1, b1, w2, b2)


def pack_params(params):
    """Fold fc_1∘fc_out (the module has no nonlinearity) and lay out for the kernel.

        y = (x @ W0 + b0) @ wf + c      with wf = W1 @ W2,  c = b1 @ W2 + b2

    W0 is transposed (so the kernel computes W0^T @ x with M on lanes) and the
    D0 dimension is zero-padded 300 -> 384.  Folds use HIGHEST precision fp32.
    """
    w0, b0, w1, b1, w2, b2 = params
    hi = lax.Precision.HIGHEST
    wf = jnp.dot(w1, w2, precision=hi)                    # (300, 1)
    c = jnp.dot(b1, w2, precision=hi) + b2                # (1,)
    pad0 = D0_PAD - D0
    w0t = jnp.pad(w0.T, ((0, pad0), (0, 0)))              # (384, H)  f32
    b0c = jnp.pad(b0, (0, pad0)).reshape(D0_PAD, 1)       # (384, 1)  f32
    wfc = jnp.pad(wf, ((0, pad0), (0, 0)))                # (384, 1)  f32
    cc = c.reshape(1, 1)                                  # (1, 1)    f32
    return (w0t, b0c, wfc, cc)


def reference_apply(x2d, params):
    """Pure-JAX fp32 reference of the unfused PyTorch math (three Linear layers)."""
    w0, b0, w1, b1, w2, b2 = params
    hi = lax.Precision.HIGHEST
    h0 = jnp.dot(x2d, w0, precision=hi) + b0
    h1 = jnp.dot(h0, w1, precision=hi) + b1
    return jnp.dot(h1, w2, precision=hi) + b2             # (M, 1)


if __name__ == "__main__":
    key = jax.random.PRNGKey(0)
    k_param, k_in, k_b1, k_b2 = jax.random.split(key, 4)

    params = init_params(k_param, H_SIZE)
    packed = pack_params(params)

    # --- single-step call matching the PyTorch forward exactly: (1,1,H) -> (1,) ---
    ctx_vec = jax.random.normal(k_in, (1, 1, H_SIZE), jnp.float32)
    pred = jax.block_until_ready(decoder_forward(ctx_vec, packed))
    assert pred.shape == (D_OUT,)
    ref1 = reference_apply(ctx_vec.reshape(1, H_SIZE), params).reshape(D_OUT)
    assert jnp.allclose(pred, ref1, atol=2e-2, rtol=2e-2), (pred, ref1)

    # --- batched decode-steps path (single grid step) ---
    xb = jax.random.normal(k_b1, (16, H_SIZE), jnp.float32)
    out_b = jax.block_until_ready(decoder_apply(xb, packed))
    assert out_b.shape == (16, D_OUT)
    ref_b = reference_apply(xb, params)
    assert jnp.allclose(out_b, ref_b, atol=2e-2, rtol=2e-2)

    # --- larger batch exercising a multi-step grid (grid_m >= 2, megacore path) ---
    xl = jax.random.normal(k_b2, (300, H_SIZE), jnp.float32)
    out_l = jax.block_until_ready(decoder_apply(xl, packed))
    assert out_l.shape == (300, D_OUT)
    ref_l = reference_apply(xl, params)
    assert jnp.allclose(out_l, ref_l, atol=2e-2, rtol=2e-2)

    print("KERNEL_OK")
</pallas_src>

<mosaic_0001>
module attributes {stable_mosaic.version = 11 : i64} {
  func.func @decoder_kernel(%arg0: i32, %arg1: memref<32x128xf32, #tpu.memory_space<vmem>>, %arg2: memref<384x32xf32, #tpu.memory_space<vmem>>, %arg3: memref<384x1xf32, #tpu.memory_space<vmem>>, %arg4: memref<384x1xf32, #tpu.memory_space<vmem>>, %arg5: memref<1x1xf32, #tpu.memory_space<vmem>>, %arg6: memref<8x128xf32, #tpu.memory_space<vmem>>) attributes {dimension_semantics = [#tpu.dimension_semantics<parallel>], iteration_bounds = array<i64: 1>, scalar_prefetch = 0 : i64, scratch_operands = 0 : i64, tpu.core_type = #tpu.core_type<tc>, window_params = [{transform_indices = @transform_0, window_bounds = array<i64: 32, 128>}, {pipeline_mode = #tpu.pipeline_mode<synchronous>, transform_indices = @transform_1, window_bounds = array<i64: 384, 32>}, {pipeline_mode = #tpu.pipeline_mode<synchronous>, transform_indices = @transform_2, window_bounds = array<i64: 384, 1>}, {pipeline_mode = #tpu.pipeline_mode<synchronous>, transform_indices = @transform_3, window_bounds = array<i64: 384, 1>}, {pipeline_mode = #tpu.pipeline_mode<synchronous>, transform_indices = @transform_4, window_bounds = array<i64: 1, 1>}, {transform_indices = @transform_5, window_bounds = array<i64: 8, 128>}]} {
    %c0 = arith.constant 0 : index
    %c0_0 = arith.constant 0 : index
    %0 = vector.load %arg1[%c0, %c0_0] : memref<32x128xf32, #tpu.memory_space<vmem>>, vector<32x128xf32>
    %c0_1 = arith.constant 0 : index
    %c0_2 = arith.constant 0 : index
    %1 = vector.load %arg2[%c0_1, %c0_2] : memref<384x32xf32, #tpu.memory_space<vmem>>, vector<384x32xf32>
    %cst = arith.constant dense<0.000000e+00> : vector<384x128xf32>
    %2 = tpu.matmul %1, %0, %cst {dimension_numbers = #tpu.dot_dimension_numbers<[1], [0], [0], [1], [0, 0, 1, 1], [], []>} : vector<384x32xf32>, vector<32x128xf32>, vector<384x128xf32> -> vector<384x128xf32>
    %c0_3 = arith.constant 0 : index
    %c0_4 = arith.constant 0 : index
    %3 = vector.load %arg3[%c0_3, %c0_4] : memref<384x1xf32, #tpu.memory_space<vmem>>, vector<384x1xf32>
    %4 = vector.broadcast %3 : vector<384x1xf32> to vector<384x128xf32>
    %5 = arith.addf %2, %4 : vector<384x128xf32>
    %c0_5 = arith.constant 0 : index
    %c0_6 = arith.constant 0 : index
    %6 = vector.load %arg4[%c0_5, %c0_6] : memref<384x1xf32, #tpu.memory_space<vmem>>, vector<384x1xf32>
    %7 = vector.broadcast %6 : vector<384x1xf32> to vector<384x128xf32>
    %8 = arith.mulf %5, %7 : vector<384x128xf32>
    %cst_7 = arith.constant dense<0.000000e+00> : vector<128xf32>
    %9 = vector.multi_reduction <add>, %8, %cst_7 [0] : vector<384x128xf32> to vector<128xf32>
    %10 = vector.shape_cast %9 : vector<128xf32> to vector<1x128xf32>
    %c0_8 = arith.constant 0 : index
    %c0_9 = arith.constant 0 : index
    %11 = vector.load %arg5[%c0_8, %c0_9] : memref<1x1xf32, #tpu.memory_space<vmem>>, vector<1x1xf32>
    %12 = vector.broadcast %11 : vector<1x1xf32> to vector<1x128xf32>
    %13 = arith.addf %10, %12 : vector<1x128xf32>
    %14 = vector.shape_cast %13 : vector<1x128xf32> to vector<1x128xf32>
    %15 = vector.broadcast %14 : vector<1x128xf32> to vector<8x128xf32>
    %c0_10 = arith.constant 0 : index
    %c0_11 = arith.constant 0 : index
    %16 = vector.load %arg6[%c0_10, %c0_11] : memref<8x128xf32, #tpu.memory_space<vmem>>, vector<8x128xf32>
    tpu.vector_store %arg6[%c0_10, %c0_11], %15 {strides = array<i32>} : memref<8x128xf32, #tpu.memory_space<vmem>>, vector<8x128xf32>,
    return
  }
  func.func @transform_0(%arg0: i32) -> (i32, i32) {
    %c0_i32 = arith.constant 0 : i32
    %c0_i32_0 = arith.constant 0 : i32
    return %c0_i32, %arg0 : i32, i32
  }
  func.func @transform_1(%arg0: i32) -> (i32, i32) {
    %c0_i32 = arith.constant 0 : i32
    %c0_i32_0 = arith.constant 0 : i32
    %c0_i32_1 = arith.constant 0 : i32
    return %c0_i32, %c0_i32_0 : i32, i32
  }
  func.func @transform_2(%arg0: i32) -> (i32, i32) {
    %c0_i32 = arith.constant 0 : i32
    %c0_i32_0 = arith.constant 0 : i32
    %c0_i32_1 = arith.constant 0 : i32
    return %c0_i32, %c0_i32_0 : i32, i32
  }
  func.func @transform_3(%arg0: i32) -> (i32, i32) {
    %c0_i32 = arith.constant 0 : i32
    %c0_i32_0 = arith.constant 0 : i32
    %c0_i32_1 = arith.constant 0 : i32
    return %c0_i32, %c0_i32_0 : i32, i32
  }
  func.func @transform_4(%arg0: i32) -> (i32, i32) {
    %c0_i32 = arith.constant 0 : i32
    %c0_i32_0 = arith.constant 0 : i32
    %c0_i32_1 = arith.constant 0 : i32
    return %c0_i32, %c0_i32_0 : i32, i32
  }
  func.func @transform_5(%arg0: i32) -> (i32, i32) {
    %c0_i32 = arith.constant 0 : i32
    %c0_i32_0 = arith.constant 0 : i32
    return %c0_i32, %arg0 : i32, i32
  }
}

</mosaic_0001>

<llo_original>
// kernel: tpu_custom_call.1
$region0: #{tpu_custom_call.1}
  #allocation0 [shape = 'u32[]', space=smem, size = 0x4, offset = 0x4, fixed_abs, tag = 'smem constant byte address 0x4 - core index']
  #allocation1 [shape = 'u32[144,128]{1,0:T(1,128)}', space=vmem, size = 0x12000, scoped, tag = 'internal scratch']
  #allocation2 [shape = 'f32[1,1]{1,0:T(1,128)S(1)}', space=vmem, size = 0x200, scoped, tag = 'scoped memory for tpu_custom_call.1']
  %s0 = inlined_call_operand.vmem [shape: f32[32,128], index: 0, kind: input, shape index: {}]
  %s1 = inlined_call_operand.vmem [shape: f32[384,32], index: 1, kind: input, shape index: {}]
  %s2 = inlined_call_operand.vmem [shape: f32[384,1], index: 2, kind: input, shape index: {}]
  %s3 = inlined_call_operand.vmem [shape: f32[384,1], index: 3, kind: input, shape index: {}]
  %s4 = inlined_call_operand.<no memory space> [shape: f32[1,1], index: 4, kind: input, shape index: {}]
  %s5 = inlined_call_operand.hbm [shape: f32[8,128], index: 5, kind: output, shape index: {}]
  %s6 = sld [smem:[#allocation0]]
  $region30: #{tpu_custom_call.1} parent=0
    _
  %s8 = ssub.s32 1, %s6
  %s9 = scalar_select 0, %s8, %s6
  %v10 = vstv %s4
  %11 = vst [vmem:[#allocation2] sm:$0x1] %v10
  $region1: #{tpu_custom_call.1} parent=0
    #allocation3 [shape = 'u8[4096]{0}', space=vmem, size = 0x1000, scoped, tag = 'output window, operand 0, single buffered']
    #allocation4 [shape = 's32[1]{0}', space=sflag, size = 0x4, scoped, tag = 'scoped memory for tpu_custom_call.1']
    %12 = vsyncpa [#allocation4], 0
    // Predicated region
    $region2: #{tpu_custom_call.1} parent=1 // pred_check
      _
    $region3: #{tpu_custom_call.1} parent=1 // pred_check_branch
      %14 = sbr.rel (0) target = $region5
    $region4: #{tpu_custom_call.1} parent=1 // pred_region
      _
    $region5: #{tpu_custom_call.1} parent=1 // pred_fallthru
      _
    // Predicated region
    $region6: #{tpu_custom_call.1} parent=1 // pred_check
      _
    $region7: #{tpu_custom_call.1} parent=1 // pred_check_branch
      %16 = sbr.rel (0) target = $region9
    $region8: #{tpu_custom_call.1} parent=1 // pred_region
      _
    $region9: #{tpu_custom_call.1} parent=1 // pred_fallthru
      _
    // Predicated region
    $region10: #{tpu_custom_call.1} parent=1 // pred_check
      _
    $region11: #{tpu_custom_call.1} parent=1 // pred_check_branch
      %18 = sbr.rel (0) target = $region13
    $region12: #{tpu_custom_call.1} parent=1 // pred_region
      _
    $region13: #{tpu_custom_call.1} parent=1 // pred_fallthru
      _
    // Predicated region
    $region14: #{tpu_custom_call.1} parent=1 // pred_check
      _
    $region15: #{tpu_custom_call.1} parent=1 // pred_check_branch
      %20 = sbr.rel (0) target = $region17
    $region16: #{tpu_custom_call.1} parent=1 // pred_region
      _
    $region17: #{tpu_custom_call.1} parent=1 // pred_fallthru
      _
    // Predicated region
    $region18: #{tpu_custom_call.1} parent=1 // pred_check
      _
    $region19: #{tpu_custom_call.1} parent=1 // pred_check_branch
      %22 = sbr.rel (0) target = $region21
    $region20: #{tpu_custom_call.1} parent=1 // pred_region
      _
    $region21: #{tpu_custom_call.1} parent=1 // pred_fallthru
      _
    %v23 = vld [vmem:[%s0] sm:$0xff]
    %v24 = vld [vmem:[%s0 + $0x8] sm:$0xff]
    %v25 = vld [vmem:[%s0 + $0x10] sm:$0xff]
    %v26 = vld [vmem:[%s0 + $0x18] sm:$0xff]
    %v27 = vld [vmem:[%s1] sm:$0xff]
    %v28 = vld [vmem:[%s1 + $0x8] sm:$0xff]
    %v29 = vld [vmem:[%s1 + $0x10] sm:$0xff]
    %v30 = vld [vmem:[%s1 + $0x18] sm:$0xff]
    %v31 = vld [vmem:[%s1 + $0x20] sm:$0xff]
    %v32 = vld [vmem:[%s1 + $0x28] sm:$0xff]
    %v33 = vld [vmem:[%s1 + $0x30] sm:$0xff]
    %v34 = vld [vmem:[%s1 + $0x38] sm:$0xff]
    %v35 = vld [vmem:[%s1 + $0x40] sm:$0xff]
    %v36 = vld [vmem:[%s1 + $0x48] sm:$0xff]
    %v37 = vld [vmem:[%s1 + $0x50] sm:$0xff]
    %v38 = vld [vmem:[%s1 + $0x58] sm:$0xff]
    %v39 = vld [vmem:[%s1 + $0x60] sm:$0xff]
    %v40 = vld [vmem:[%s1 + $0x68] sm:$0xff]
    %v41 = vld [vmem:[%s1 + $0x70] sm:$0xff]
    %v42 = vld [vmem:[%s1 + $0x78] sm:$0xff]
    %v43 = vld [vmem:[%s1 + $0x80] sm:$0xff]
    %v44 = vld [vmem:[%s1 + $0x88] sm:$0xff]
    %v45 = vld [vmem:[%s1 + $0x90] sm:$0xff]
    %v46 = vld [vmem:[%s1 + $0x98] sm:$0xff]
    %v47 = vld [vmem:[%s1 + $0xa0] sm:$0xff]
    %v48 = vld [vmem:[%s1 + $0xa8] sm:$0xff]
    %v49 = vld [vmem:[%s1 + $0xb0] sm:$0xff]
    %v50 = vld [vmem:[%s1 + $0xb8] sm:$0xff]
    %v51 = vld [vmem:[%s1 + $0xc0] sm:$0xff]
    %v52 = vld [vmem:[%s1 + $0xc8] sm:$0xff]
    %v53 = vld [vmem:[%s1 + $0xd0] sm:$0xff]
    %v54 = vld [vmem:[%s1 + $0xd8] sm:$0xff]
    %v55 = vld [vmem:[%s1 + $0xe0] sm:$0xff]
    %v56 = vld [vmem:[%s1 + $0xe8] sm:$0xff]
    %v57 = vld [vmem:[%s1 + $0xf0] sm:$0xff]
    %v58 = vld [vmem:[%s1 + $0xf8] sm:$0xff]
    %v59 = vld [vmem:[%s1 + $0x100] sm:$0xff]
    %v60 = vld [vmem:[%s1 + $0x108] sm:$0xff]
    %v61 = vld [vmem:[%s1 + $0x110] sm:$0xff]
    %v62 = vld [vmem:[%s1 + $0x118] sm:$0xff]
    %v63 = vld [vmem:[%s1 + $0x120] sm:$0xff]
    %v64 = vld [vmem:[%s1 + $0x128] sm:$0xff]
    %v65 = vld [vmem:[%s1 + $0x130] sm:$0xff]
    %v66 = vld [vmem:[%s1 + $0x138] sm:$0xff]
    %v67 = vld [vmem:[%s1 + $0x140] sm:$0xff]
    %v68 = vld [vmem:[%s1 + $0x148] sm:$0xff]
    %v69 = vld [vmem:[%s1 + $0x150] sm:$0xff]
    %v70 = vld [vmem:[%s1 + $0x158] sm:$0xff]
    %v71 = vld [vmem:[%s1 + $0x160] sm:$0xff]
    %v72 = vld [vmem:[%s1 + $0x168] sm:$0xff]
    %v73 = vld [vmem:[%s1 + $0x170] sm:$0xff]
    %v74 = vld [vmem:[%s1 + $0x178] sm:$0xff]
    %v75 = vld [vmem:[%s2] sm:$0xff]
    %v76 = vld [vmem:[%s2 + $0x8] sm:$0xff]
    %v77 = vld [vmem:[%s2 + $0x10] sm:$0xff]
    %v78 = vld [vmem:[%s2 + $0x18] sm:$0xff]
    %v79 = vld [vmem:[%s2 + $0x20] sm:$0xff]
    %v80 = vld [vmem:[%s2 + $0x28] sm:$0xff]
    %v81 = vld [vmem:[%s2 + $0x30] sm:$0xff]
    %v82 = vld [vmem:[%s2 + $0x38] sm:$0xff]
    %v83 = vld [vmem:[%s2 + $0x40] sm:$0xff]
    %v84 = vld [vmem:[%s2 + $0x48] sm:$0xff]
    %v85 = vld [vmem:[%s2 + $0x50] sm:$0xff]
    %v86 = vld [vmem:[%s2 + $0x58] sm:$0xff]
    %v87 = vld [vmem:[%s2 + $0x60] sm:$0xff]
    %v88 = vld [vmem:[%s2 + $0x68] sm:$0xff]
    %v89 = vld [vmem:[%s2 + $0x70] sm:$0xff]
    %v90 = vld [vmem:[%s2 + $0x78] sm:$0xff]
    %v91 = vld [vmem:[%s2 + $0x80] sm:$0xff]
    %v92 = vld [vmem:[%s2 + $0x88] sm:$0xff]
    %v93 = vld [vmem:[%s2 + $0x90] sm:$0xff]
    %v94 = vld [vmem:[%s2 + $0x98] sm:$0xff]
    %v95 = vld [vmem:[%s2 + $0xa0] sm:$0xff]
    %v96 = vld [vmem:[%s2 + $0xa8] sm:$0xff]
    %v97 = vld [vmem:[%s2 + $0xb0] sm:$0xff]
    %v98 = vld [vmem:[%s2 + $0xb8] sm:$0xff]
    %v99 = vld [vmem:[%s2 + $0xc0] sm:$0xff]
    %v100 = vld [vmem:[%s2 + $0xc8] sm:$0xff]
    %v101 = vld [vmem:[%s2 + $0xd0] sm:$0xff]
    %v102 = vld [vmem:[%s2 + $0xd8] sm:$0xff]
    %v103 = vld [vmem:[%s2 + $0xe0] sm:$0xff]
    %v104 = vld [vmem:[%s2 + $0xe8] sm:$0xff]
    %v105 = vld [vmem:[%s2 + $0xf0] sm:$0xff]
    %v106 = vld [vmem:[%s2 + $0xf8] sm:$0xff]
    %v107 = vld [vmem:[%s2 + $0x100] sm:$0xff]
    %v108 = vld [vmem:[%s2 + $0x108] sm:$0xff]
    %v109 = vld [vmem:[%s2 + $0x110] sm:$0xff]
    %v110 = vld [vmem:[%s2 + $0x118] sm:$0xff]
    %v111 = vld [vmem:[%s2 + $0x120] sm:$0xff]
    %v112 = vld [vmem:[%s2 + $0x128] sm:$0xff]
    %v113 = vld [vmem:[%s2 + $0x130] sm:$0xff]
    %v114 = vld [vmem:[%s2 + $0x138] sm:$0xff]
    %v115 = vld [vmem:[%s2 + $0x140] sm:$0xff]
    %v116 = vld [vmem:[%s2 + $0x148] sm:$0xff]
    %v117 = vld [vmem:[%s2 + $0x150] sm:$0xff]
    %v118 = vld [vmem:[%s2 + $0x158] sm:$0xff]
    %v119 = vld [vmem:[%s2 + $0x160] sm:$0xff]
    %v120 = vld [vmem:[%s2 + $0x168] sm:$0xff]
    %v121 = vld [vmem:[%s2 + $0x170] sm:$0xff]
    %v122 = vld [vmem:[%s2 + $0x178] sm:$0xff]
    %124 = vset.pattern.permute.xlu0 0
    %125 = vperm.xlu0 %124, %v75
    %v126 = vpop.permute.xlu0 %125
    %129 = vset.pattern.permute.xlu0 0
    %130 = vperm.xlu0 %129, %v76
    %v131 = vpop.permute.xlu0 %130
    %134 = vset.pattern.permute.xlu0 0
    %135 = vperm.xlu0 %134, %v77
    %v136 = vpop.permute.xlu0 %135
    %139 = vset.pattern.permute.xlu0 0
    %140 = vperm.xlu0 %139, %v78
    %v141 = vpop.permute.xlu0 %140
    %144 = vset.pattern.permute.xlu0 0
    %145 = vperm.xlu0 %144, %v79
    %v146 = vpop.permute.xlu0 %145
    %149 = vset.pattern.permute.xlu0 0
    %150 = vperm.xlu0 %149, %v80
    %v151 = vpop.permute.xlu0 %150
    %154 = vset.pattern.permute.xlu0 0
    %155 = vperm.xlu0 %154, %v81
    %v156 = vpop.permute.xlu0 %155
    %159 = vset.pattern.permute.xlu0 0
    %160 = vperm.xlu0 %159, %v82
    %v161 = vpop.permute.xlu0 %160
    %164 = vset.pattern.permute.xlu0 0
    %165 = vperm.xlu0 %164, %v83
    %v166 = vpop.permute.xlu0 %165
    %169 = vset.pattern.permute.xlu0 0
    %170 = vperm.xlu0 %169, %v84
    %v171 = vpop.permute.xlu0 %170
    %174 = vset.pattern.permute.xlu0 0
    %175 = vperm.xlu0 %174, %v85
    %v176 = vpop.permute.xlu0 %175
    %179 = vset.pattern.permute.xlu0 0
    %180 = vperm.xlu0 %179, %v86
    %v181 = vpop.permute.xlu0 %180
    %184 = vset.pattern.permute.xlu0 0
    %185 = vperm.xlu0 %184, %v87
    %v186 = vpop.permute.xlu0 %185
    %189 = vset.pattern.permute.xlu0 0
    %190 = vperm.xlu0 %189, %v88
    %v191 = vpop.permute.xlu0 %190
    %194 = vset.pattern.permute.xlu0 0
    %195 = vperm.xlu0 %194, %v89
    %v196 = vpop.permute.xlu0 %195
    %199 = vset.pattern.permute.xlu0 0
    %200 = vperm.xlu0 %199, %v90
    %v201 = vpop.permute.xlu0 %200
    %204 = vset.pattern.permute.xlu0 0
    %205 = vperm.xlu0 %204, %v91
    %v206 = vpop.permute.xlu0 %205
    %209 = vset.pattern.permute.xlu0 0
    %210 = vperm.xlu0 %209, %v92
    %v211 = vpop.permute.xlu0 %210
    %214 = vset.pattern.permute.xlu0 0
    %215 = vperm.xlu0 %214, %v93
    %v216 = vpop.permute.xlu0 %215
    %219 = vset.pattern.permute.xlu0 0
    %220 = vperm.xlu0 %219, %v94
    %v221 = vpop.permute.xlu0 %220
    %224 = vset.pattern.permute.xlu0 0
    %225 = vperm.xlu0 %224, %v95
    %v226 = vpop.permute.xlu0 %225
    %229 = vset.pattern.permute.xlu0 0
    %230 = vperm.xlu0 %229, %v96
    %v231 = vpop.permute.xlu0 %230
    %234 = vset.pattern.permute.xlu0 0
    %235 = vperm.xlu0 %234, %v97
    %v236 = vpop.permute.xlu0 %235
    %239 = vset.pattern.permute.xlu0 0
    %240 = vperm.xlu0 %239, %v98
    %v241 = vpop.permute.xlu0 %240
    %244 = vset.pattern.permute.xlu0 0
    %245 = vperm.xlu0 %244, %v99
    %v246 = vpop.permute.xlu0 %245
    %249 = vset.pattern.permute.xlu0 0
    %250 = vperm.xlu0 %249, %v100
    %v251 = vpop.permute.xlu0 %250
    %254 = vset.pattern.permute.xlu0 0
    %255 = vperm.xlu0 %254, %v101
    %v256 = vpop.permute.xlu0 %255
    %259 = vset.pattern.permute.xlu0 0
    %260 = vperm.xlu0 %259, %v102
    %v261 = vpop.permute.xlu0 %260
    %264 = vset.pattern.permute.xlu0 0
    %265 = vperm.xlu0 %264, %v103
    %v266 = vpop.permute.xlu0 %265
    %269 = vset.pattern.permute.xlu0 0
    %270 = vperm.xlu0 %269, %v104
    %v271 = vpop.permute.xlu0 %270
    %274 = vset.pattern.permute.xlu0 0
    %275 = vperm.xlu0 %274, %v105
    %v276 = vpop.permute.xlu0 %275
    %279 = vset.pattern.permute.xlu0 0
    %280 = vperm.xlu0 %279, %v106
    %v281 = vpop.permute.xlu0 %280
    %284 = vset.pattern.permute.xlu0 0
    %285 = vperm.xlu0 %284, %v107
    %v286 = vpop.permute.xlu0 %285
    %289 = vset.pattern.permute.xlu0 0
    %290 = vperm.xlu0 %289, %v108
    %v291 = vpop.permute.xlu0 %290
    %294 = vset.pattern.permute.xlu0 0
    %295 = vperm.xlu0 %294, %v109
    %v296 = vpop.permute.xlu0 %295
    %299 = vset.pattern.permute.xlu0 0
    %300 = vperm.xlu0 %299, %v110
    %v301 = vpop.permute.xlu0 %300
    %304 = vset.pattern.permute.xlu0 0
    %305 = vperm.xlu0 %304, %v111
    %v306 = vpop.permute.xlu0 %305
    %309 = vset.pattern.permute.xlu0 0
    %310 = vperm.xlu0 %309, %v112
    %v311 = vpop.permute.xlu0 %310
    %314 = vset.pattern.permute.xlu0 0
    %315 = vperm.xlu0 %314, %v113
    %v316 = vpop.permute.xlu0 %315
    %319 = vset.pattern.permute.xlu0 0
    %320 = vperm.xlu0 %319, %v114
    %v321 = vpop.permute.xlu0 %320
    %324 = vset.pattern.permute.xlu0 0
    %325 = vperm.xlu0 %324, %v115
    %v326 = vpop.permute.xlu0 %325
    %329 = vset.pattern.permute.xlu0 0
    %330 = vperm.xlu0 %329, %v116
    %v331 = vpop.permute.xlu0 %330
    %334 = vset.pattern.permute.xlu0 0
    %335 = vperm.xlu0 %334, %v117
    %v336 = vpop.permute.xlu0 %335
    %339 = vset.pattern.permute.xlu0 0
    %340 = vperm.xlu0 %339, %v118
    %v341 = vpop.permute.xlu0 %340
    %344 = vset.pattern.permute.xlu0 0
    %345 = vperm.xlu0 %344, %v119
    %v346 = vpop.permute.xlu0 %345
    %349 = vset.pattern.permute.xlu0 0
    %350 = vperm.xlu0 %349, %v120
    %v351 = vpop.permute.xlu0 %350
    %354 = vset.pattern.permute.xlu0 0
    %355 = vperm.xlu0 %354, %v121
    %v356 = vpop.permute.xlu0 %355
    %359 = vset.pattern.permute.xlu0 0
    %360 = vperm.xlu0 %359, %v122
    %v361 = vpop.permute.xlu0 %360
    %vm363 = vcmask 261120
    %v365 = vsel %vm363, %v27, 0
    %v368 = vsel %vm363, %v28, 0
    %v371 = vsel %vm363, %v29, 0
    %v374 = vsel %vm363, %v30, 0
    %v377 = vsel %vm363, %v31, 0
    %v380 = vsel %vm363, %v32, 0
    %v383 = vsel %vm363, %v33, 0
    %v386 = vsel %vm363, %v34, 0
    %v389 = vsel %vm363, %v35, 0
    %v392 = vsel %vm363, %v36, 0
    %v395 = vsel %vm363, %v37, 0
    %v398 = vsel %vm363, %v38, 0
    %v401 = vsel %vm363, %v39, 0
    %v404 = vsel %vm363, %v40, 0
    %v407 = vsel %vm363, %v41, 0
    %v410 = vsel %vm363, %v42, 0
    %v413 = vsel %vm363, %v43, 0
    %v416 = vsel %vm363, %v44, 0
    %v419 = vsel %vm363, %v45, 0
    %v422 = vsel %vm363, %v46, 0
    %v425 = vsel %vm363, %v47, 0
    %v428 = vsel %vm363, %v48, 0
    %v431 = vsel %vm363, %v49, 0
    %v434 = vsel %vm363, %v50, 0
    %v437 = vsel %vm363, %v51, 0
    %v440 = vsel %vm363, %v52, 0
    %v443 = vsel %vm363, %v53, 0
    %v446 = vsel %vm363, %v54, 0
    %v449 = vsel %vm363, %v55, 0
    %v452 = vsel %vm363, %v56, 0
    %v455 = vsel %vm363, %v57, 0
    %v458 = vsel %vm363, %v58, 0
    %v461 = vsel %vm363, %v59, 0
    %v464 = vsel %vm363, %v60, 0
    %v467 = vsel %vm363, %v61, 0
    %v470 = vsel %vm363, %v62, 0
    %v473 = vsel %vm363, %v63, 0
    %v476 = vsel %vm363, %v64, 0
    %v479 = vsel %vm363, %v65, 0
    %v482 = vsel %vm363, %v66, 0
    %v485 = vsel %vm363, %v67, 0
    %v488 = vsel %vm363, %v68, 0
    %v491 = vsel %vm363, %v69, 0
    %v494 = vsel %vm363, %v70, 0
    %v497 = vsel %vm363, %v71, 0
    %v500 = vsel %vm363, %v72, 0
    %v503 = vsel %vm363, %v73, 0
    %v506 = vsel %vm363, %v74, 0
    %508 = vmatprep.subr.mxu0 0.0
    %509 = vmatpush1.msra.mxu0 0.0
    %510 = vmatprep.subr.mxu0 0.0
    %511 = vmatpush1.msra.mxu0 0.0
    %512 = vmatprep.subr.mxu0 0.0
    %513 = vmatpush1.msra.mxu0 0.0
    %514 = vmatprep.subr.mxu0 0.0
    %515 = vmatpush1.msra.mxu0 0.0
    %516 = vmatprep.subr.mxu0 0.0
    %517 = vmatpush1.msra.mxu0 0.0
    %518 = vmatprep.subr.mxu0 0.0
    %519 = vmatpush1.msra.mxu0 0.0
    %520 = vmatprep.subr.mxu0 0.0
    %521 = vmatpush1.msra.mxu0 0.0
    %522 = vmatprep.subr.mxu0 0.0
    %523 = vmatpush1.msra.mxu0 0.0
    %524 = vmatprep.subr.mxu0 0.0
    %525 = vmatpush1.msra.mxu0 0.0
    %526 = vmatprep.subr.mxu0 0.0
    %527 = vmatpush1.msra.mxu0 0.0
    %528 = vmatprep.subr.mxu0 0.0
    %529 = vmatpush1.msra.mxu0 0.0
    %530 = vmatprep.subr.mxu0 0.0
    %531 = vmatpush1.msra.mxu0 0.0
    %532 = vmatprep.subr.mxu0 0.0
    %533 = vmatpush1.msra.mxu0 %v26
    %534 = vmatprep.subr.mxu0 0.0
    %535 = vmatpush1.msra.mxu0 %v25
    %536 = vmatprep.subr.mxu0 0.0
    %537 = vmatpush1.msra.mxu0 %v24
    %538 = vmatprep.subr.mxu0 0.0
    %539 = vmatpush1.msra.mxu0 %v23
    %540 = vmatprep.subr.mxu0 0.0
    %541 = vmatpush2.msra.mxu0 0.0
    %542 = vmatprep.subr.mxu0 0.0
    %543 = vmatpush2.msra.mxu0 0.0
    %544 = vmatprep.subr.mxu0 0.0
    %545 = vmatpush2.msra.mxu0 0.0
    %546 = vmatprep.subr.mxu0 0.0
    %547 = vmatpush2.msra.mxu0 0.0
    %548 = vmatprep.subr.mxu0 0.0
    %549 = vmatpush2.msra.mxu0 0.0
    %550 = vmatprep.subr.mxu0 0.0
    %551 = vmatpush2.msra.mxu0 0.0
    %552 = vmatprep.subr.mxu0 0.0
    %553 = vmatpush2.msra.mxu0 0.0
    %554 = vmatprep.subr.mxu0 0.0
    %555 = vmatpush2.msra.mxu0 0.0
    %556 = vmatprep.subr.mxu0 0.0
    %557 = vmatpush2.msra.mxu0 0.0
    %558 = vmatprep.subr.mxu0 0.0
    %559 = vmatpush2.msra.mxu0 0.0
    %560 = vmatprep.subr.mxu0 0.0
    %561 = vmatpush2.msra.mxu0 0.0
    %562 = vmatprep.subr.mxu0 0.0
    %563 = vmatpush2.msra.mxu0 0.0
    %564 = vmatprep.subr.mxu0 0.0
    %565 = vmatpush2.msra.mxu0 0.0
    %566 = vmatprep.subr.mxu0 0.0
    %567 = vmatpush2.msra.mxu0 0.0
    %568 = vmatprep.subr.mxu0 0.0
    %569 = vmatpush2.msra.mxu0 0.0
    %570 = vmatprep.subr.mxu0 0.0
    %571 = vmatpush2.msra.mxu0 0.0
    %572 = vmatprep.mubr.f32.mxu0 0.0
    %573 = vmatmul.mubr.f32.gmra.mxu0 %v365
    %v574 = vpop.f32.mrf.mxu0
    %v575 = vadd.f32 %v126, %v574
    %v576 = vpop.f32.mrf.mxu0
    %577 = vmatprep.mubr.f32.mxu0 0.0
    %578 = vmatmul.mubr.f32.gmra.mxu0 %v368
    %v579 = vpop.f32.mrf.mxu0
    %v580 = vadd.f32 %v131, %v579
    %v581 = vpop.f32.mrf.mxu0
    %582 = vmatprep.mubr.f32.mxu0 0.0
    %583 = vmatmul.mubr.f32.gmra.mxu0 %v371
    %v584 = vpop.f32.mrf.mxu0
    %v585 = vadd.f32 %v136, %v584
    %v586 = vpop.f32.mrf.mxu0
    %587 = vmatprep.mubr.f32.mxu0 0.0
    %588 = vmatmul.mubr.f32.gmra.mxu0 %v374
    %v589 = vpop.f32.mrf.mxu0
    %v590 = vadd.f32 %v141, %v589
    %v591 = vpop.f32.mrf.mxu0
    %592 = vmatprep.mubr.f32.mxu0 0.0
    %593 = vmatmul.mubr.f32.gmra.mxu0 %v377
    %v594 = vpop.f32.mrf.mxu0
    %v595 = vadd.f32 %v146, %v594
    %v596 = vpop.f32.mrf.mxu0
    %597 = vmatprep.mubr.f32.mxu0 0.0
    %598 = vmatmul.mubr.f32.gmra.mxu0 %v380
    %v599 = vpop.f32.mrf.mxu0
    %v600 = vadd.f32 %v151, %v599
    %v601 = vpop.f32.mrf.mxu0
    %602 = vmatprep.mubr.f32.mxu0 0.0
    %603 = vmatmul.mubr.f32.gmra.mxu0 %v383
    %v604 = vpop.f32.mrf.mxu0
    %v605 = vadd.f32 %v156, %v604
    %v606 = vpop.f32.mrf.mxu0
    %607 = vmatprep.mubr.f32.mxu0 0.0
    %608 = vmatmul.mubr.f32.gmra.mxu0 %v386
    %v609 = vpop.f32.mrf.mxu0
    %v610 = vadd.f32 %v161, %v609
    %v611 = vpop.f32.mrf.mxu0
    %612 = vmatprep.mubr.f32.mxu0 0.0
    %613 = vmatmul.mubr.f32.gmra.mxu0 %v389
    %v614 = vpop.f32.mrf.mxu0
    %v615 = vadd.f32 %v166, %v614
    %v616 = vpop.f32.mrf.mxu0
    %617 = vmatprep.mubr.f32.mxu0 0.0
    %618 = vmatmul.mubr.f32.gmra.mxu0 %v392
    %v619 = vpop.f32.mrf.mxu0
    %v620 = vadd.f32 %v171, %v619
    %v621 = vpop.f32.mrf.mxu0
    %622 = vmatprep.mubr.f32.mxu0 0.0
    %623 = vmatmul.mubr.f32.gmra.mxu0 %v395
    %v624 = vpop.f32.mrf.mxu0
    %v625 = vadd.f32 %v176, %v624
    %v626 = vpop.f32.mrf.mxu0
    %627 = vmatprep.mubr.f32.mxu0 0.0
    %628 = vmatmul.mubr.f32.gmra.mxu0 %v398
    %v629 = vpop.f32.mrf.mxu0
    %v630 = vadd.f32 %v181, %v629
    %v631 = vpop.f32.mrf.mxu0
    %632 = vmatprep.mubr.f32.mxu0 0.0
    %633 = vmatmul.mubr.f32.gmra.mxu0 %v401
    %v634 = vpop.f32.mrf.mxu0
    %v635 = vadd.f32 %v186, %v634
    %v636 = vpop.f32.mrf.mxu0
    %637 = vmatprep.mubr.f32.mxu0 0.0
    %638 = vmatmul.mubr.f32.gmra.mxu0 %v404
    %v639 = vpop.f32.mrf.mxu0
    %v640 = vadd.f32 %v191, %v639
    %v641 = vpop.f32.mrf.mxu0
    %642 = vmatprep.mubr.f32.mxu0 0.0
    %643 = vmatmul.mubr.f32.gmra.mxu0 %v407
    %v644 = vpop.f32.mrf.mxu0
    %v645 = vadd.f32 %v196, %v644
    %v646 = vpop.f32.mrf.mxu0
    %647 = vmatprep.mubr.f32.mxu0 0.0
    %648 = vmatmul.mubr.f32.gmra.mxu0 %v410
    %v649 = vpop.f32.mrf.mxu0
    %v650 = vadd.f32 %v201, %v649
    %v651 = vpop.f32.mrf.mxu0
    %652 = vmatprep.mubr.f32.mxu0 0.0
    %653 = vmatmul.mubr.f32.gmra.mxu0 %v413
    %v654 = vpop.f32.mrf.mxu0
    %v655 = vadd.f32 %v206, %v654
    %v656 = vpop.f32.mrf.mxu0
    %657 = vmatprep.mubr.f32.mxu0 0.0
    %658 = vmatmul.mubr.f32.gmra.mxu0 %v416
    %v659 = vpop.f32.mrf.mxu0
    %v660 = vadd.f32 %v211, %v659
    %v661 = vpop.f32.mrf.mxu0
    %662 = vmatprep.mubr.f32.mxu0 0.0
    %663 = vmatmul.mubr.f32.gmra.mxu0 %v419
    %v664 = vpop.f32.mrf.mxu0
    %v665 = vadd.f32 %v216, %v664
    %v666 = vpop.f32.mrf.mxu0
    %667 = vmatprep.mubr.f32.mxu0 0.0
    %668 = vmatmul.mubr.f32.gmra.mxu0 %v422
    %v669 = vpop.f32.mrf.mxu0
    %v670 = vadd.f32 %v221, %v669
    %v671 = vpop.f32.mrf.mxu0
    %672 = vmatprep.mubr.f32.mxu0 0.0
    %673 = vmatmul.mubr.f32.gmra.mxu0 %v425
    %v674 = vpop.f32.mrf.mxu0
    %v675 = vadd.f32 %v226, %v674
    %v676 = vpop.f32.mrf.mxu0
    %677 = vmatprep.mubr.f32.mxu0 0.0
    %678 = vmatmul.mubr.f32.gmra.mxu0 %v428
    %v679 = vpop.f32.mrf.mxu0
    %v680 = vadd.f32 %v231, %v679
    %v681 = vpop.f32.mrf.mxu0
    %682 = vmatprep.mubr.f32.mxu0 0.0
    %683 = vmatmul.mubr.f32.gmra.mxu0 %v431
    %v684 = vpop.f32.mrf.mxu0
    %v685 = vadd.f32 %v236, %v684
    %v686 = vpop.f32.mrf.mxu0
    %687 = vmatprep.mubr.f32.mxu0 0.0
    %688 = vmatmul.mubr.f32.gmra.mxu0 %v434
    %v689 = vpop.f32.mrf.mxu0
    %v690 = vadd.f32 %v241, %v689
    %v691 = vpop.f32.mrf.mxu0
    %692 = vmatprep.mubr.f32.mxu0 0.0
    %693 = vmatmul.mubr.f32.gmra.mxu0 %v437
    %v694 = vpop.f32.mrf.mxu0
    %v695 = vadd.f32 %v246, %v694
    %v696 = vpop.f32.mrf.mxu0
    %697 = vmatprep.mubr.f32.mxu0 0.0
    %698 = vmatmul.mubr.f32.gmra.mxu0 %v440
    %v699 = vpop.f32.mrf.mxu0
    %v700 = vadd.f32 %v251, %v699
    %v701 = vpop.f32.mrf.mxu0
    %702 = vmatprep.mubr.f32.mxu0 0.0
    %703 = vmatmul.mubr.f32.gmra.mxu0 %v443
    %v704 = vpop.f32.mrf.mxu0
    %v705 = vadd.f32 %v256, %v704
    %v706 = vpop.f32.mrf.mxu0
    %707 = vmatprep.mubr.f32.mxu0 0.0
    %708 = vmatmul.mubr.f32.gmra.mxu0 %v446
    %v709 = vpop.f32.mrf.mxu0
    %v710 = vadd.f32 %v261, %v709
    %v711 = vpop.f32.mrf.mxu0
    %712 = vmatprep.mubr.f32.mxu0 0.0
    %713 = vmatmul.mubr.f32.gmra.mxu0 %v449
    %v714 = vpop.f32.mrf.mxu0
    %v715 = vadd.f32 %v266, %v714
    %v716 = vpop.f32.mrf.mxu0
    %717 = vmatprep.mubr.f32.mxu0 0.0
    %718 = vmatmul.mubr.f32.gmra.mxu0 %v452
    %v719 = vpop.f32.mrf.mxu0
    %v720 = vadd.f32 %v271, %v719
    %v721 = vpop.f32.mrf.mxu0
    %722 = vmatprep.mubr.f32.mxu0 0.0
    %723 = vmatmul.mubr.f32.gmra.mxu0 %v455
    %v724 = vpop.f32.mrf.mxu0
    %v725 = vadd.f32 %v276, %v724
    %v726 = vpop.f32.mrf.mxu0
    %727 = vmatprep.mubr.f32.mxu0 0.0
    %728 = vmatmul.mubr.f32.gmra.mxu0 %v458
    %v729 = vpop.f32.mrf.mxu0
    %v730 = vadd.f32 %v281, %v729
    %v731 = vpop.f32.mrf.mxu0
    %732 = vmatprep.mubr.f32.mxu0 0.0
    %733 = vmatmul.mubr.f32.gmra.mxu0 %v461
    %v734 = vpop.f32.mrf.mxu0
    %v735 = vadd.f32 %v286, %v734
    %v736 = vpop.f32.mrf.mxu0
    %737 = vmatprep.mubr.f32.mxu0 0.0
    %738 = vmatmul.mubr.f32.gmra.mxu0 %v464
    %v739 = vpop.f32.mrf.mxu0
    %v740 = vadd.f32 %v291, %v739
    %v741 = vpop.f32.mrf.mxu0
    %742 = vmatprep.mubr.f32.mxu0 0.0
    %743 = vmatmul.mubr.f32.gmra.mxu0 %v467
    %v744 = vpop.f32.mrf.mxu0
    %v745 = vadd.f32 %v296, %v744
    %v746 = vpop.f32.mrf.mxu0
    %747 = vmatprep.mubr.f32.mxu0 0.0
    %748 = vmatmul.mubr.f32.gmra.mxu0 %v470
    %v749 = vpop.f32.mrf.mxu0
    %v750 = vadd.f32 %v301, %v749
    %v751 = vpop.f32.mrf.mxu0
    %752 = vmatprep.mubr.f32.mxu0 0.0
    %753 = vmatmul.mubr.f32.gmra.mxu0 %v473
    %v754 = vpop.f32.mrf.mxu0
    %v755 = vadd.f32 %v306, %v754
    %v756 = vpop.f32.mrf.mxu0
    %757 = vmatprep.mubr.f32.mxu0 0.0
    %758 = vmatmul.mubr.f32.gmra.mxu0 %v476
    %v759 = vpop.f32.mrf.mxu0
    %v760 = vadd.f32 %v311, %v759
    %v761 = vpop.f32.mrf.mxu0
    %762 = vmatprep.mubr.f32.mxu0 0.0
    %763 = vmatmul.mubr.f32.gmra.mxu0 %v479
    %v764 = vpop.f32.mrf.mxu0
    %v765 = vadd.f32 %v316, %v764
    %v766 = vpop.f32.mrf.mxu0
    %767 = vmatprep.mubr.f32.mxu0 0.0
    %768 = vmatmul.mubr.f32.gmra.mxu0 %v482
    %v769 = vpop.f32.mrf.mxu0
    %v770 = vadd.f32 %v321, %v769
    %v771 = vpop.f32.mrf.mxu0
    %772 = vmatprep.mubr.f32.mxu0 0.0
    %773 = vmatmul.mubr.f32.gmra.mxu0 %v485
    %v774 = vpop.f32.mrf.mxu0
    %v775 = vadd.f32 %v326, %v774
    %v776 = vpop.f32.mrf.mxu0
    %777 = vmatprep.mubr.f32.mxu0 0.0
    %778 = vmatmul.mubr.f32.gmra.mxu0 %v488
    %v779 = vpop.f32.mrf.mxu0
    %v780 = vadd.f32 %v331, %v779
    %v781 = vpop.f32.mrf.mxu0
    %782 = vmatprep.mubr.f32.mxu0 0.0
    %783 = vmatmul.mubr.f32.gmra.mxu0 %v491
    %v784 = vpop.f32.mrf.mxu0
    %v785 = vadd.f32 %v336, %v784
    %v786 = vpop.f32.mrf.mxu0
    %787 = vmatprep.mubr.f32.mxu0 0.0
    %788 = vmatmul.mubr.f32.gmra.mxu0 %v494
    %v789 = vpop.f32.mrf.mxu0
    %v790 = vadd.f32 %v341, %v789
    %v791 = vpop.f32.mrf.mxu0
    %792 = vmatprep.mubr.f32.mxu0 0.0
    %793 = vmatmul.mubr.f32.gmra.mxu0 %v497
    %v794 = vpop.f32.mrf.mxu0
    %v795 = vadd.f32 %v346, %v794
    %v796 = vpop.f32.mrf.mxu0
    %797 = vmatprep.mubr.f32.mxu0 0.0
    %798 = vmatmul.mubr.f32.gmra.mxu0 %v500
    %v799 = vpop.f32.mrf.mxu0
    %v800 = vadd.f32 %v351, %v799
    %v801 = vpop.f32.mrf.mxu0
    %802 = vmatprep.mubr.f32.mxu0 0.0
    %803 = vmatmul.mubr.f32.gmra.mxu0 %v503
    %v804 = vpop.f32.mrf.mxu0
    %v805 = vadd.f32 %v356, %v804
    %v806 = vpop.f32.mrf.mxu0
    %807 = vmatprep.mubr.f32.mxu0 0.0
    %808 = vmatmul.mubr.f32.gmra.mxu0 %v506
    %v809 = vpop.f32.mrf.mxu0
    %v810 = vadd.f32 %v361, %v809
    %v811 = vpop.f32.mrf.mxu0
    %812 = vdwg.mxu0
    %v813 = vld [vmem:[%s3] sm:$0xff]
    %v814 = vld [vmem:[%s3 + $0x8] sm:$0xff]
    %v815 = vld [vmem:[%s3 + $0x10] sm:$0xff]
    %v816 = vld [vmem:[%s3 + $0x18] sm:$0xff]
    %v817 = vld [vmem:[%s3 + $0x20] sm:$0xff]
    %v818 = vld [vmem:[%s3 + $0x28] sm:$0xff]
    %v819 = vld [vmem:[%s3 + $0x30] sm:$0xff]
    %v820 = vld [vmem:[%s3 + $0x38] sm:$0xff]
    %v821 = vld [vmem:[%s3 + $0x40] sm:$0xff]
    %v822 = vld [vmem:[%s3 + $0x48] sm:$0xff]
    %v823 = vld [vmem:[%s3 + $0x50] sm:$0xff]
    %v824 = vld [vmem:[%s3 + $0x58] sm:$0xff]
    %v825 = vld [vmem:[%s3 + $0x60] sm:$0xff]
    %v826 = vld [vmem:[%s3 + $0x68] sm:$0xff]
    %v827 = vld [vmem:[%s3 + $0x70] sm:$0xff]
    %v828 = vld [vmem:[%s3 + $0x78] sm:$0xff]
    %v829 = vld [vmem:[%s3 + $0x80] sm:$0xff]
    %v830 = vld [vmem:[%s3 + $0x88] sm:$0xff]
    %v831 = vld [vmem:[%s3 + $0x90] sm:$0xff]
    %v832 = vld [vmem:[%s3 + $0x98] sm:$0xff]
    %v833 = vld [vmem:[%s3 + $0xa0] sm:$0xff]
    %v834 = vld [vmem:[%s3 + $0xa8] sm:$0xff]
    %v835 = vld [vmem:[%s3 + $0xb0] sm:$0xff]
    %v836 = vld [vmem:[%s3 + $0xb8] sm:$0xff]
    %v837 = vld [vmem:[%s3 + $0xc0] sm:$0xff]
    %v838 = vld [vmem:[%s3 + $0xc8] sm:$0xff]
    %v839 = vld [vmem:[%s3 + $0xd0] sm:$0xff]
    %v840 = vld [vmem:[%s3 + $0xd8] sm:$0xff]
    %v841 = vld [vmem:[%s3 + $0xe0] sm:$0xff]
    %v842 = vld [vmem:[%s3 + $0xe8] sm:$0xff]
    %v843 = vld [vmem:[%s3 + $0xf0] sm:$0xff]
    %v844 = vld [vmem:[%s3 + $0xf8] sm:$0xff]
    %v845 = vld [vmem:[%s3 + $0x100] sm:$0xff]
    %v846 = vld [vmem:[%s3 + $0x108] sm:$0xff]
    %v847 = vld [vmem:[%s3 + $0x110] sm:$0xff]
    %v848 = vld [vmem:[%s3 + $0x118] sm:$0xff]
    %v849 = vld [vmem:[%s3 + $0x120] sm:$0xff]
    %v850 = vld [vmem:[%s3 + $0x128] sm:$0xff]
    %v851 = vld [vmem:[%s3 + $0x130] sm:$0xff]
    %v852 = vld [vmem:[%s3 + $0x138] sm:$0xff]
    %v853 = vld [vmem:[%s3 + $0x140] sm:$0xff]
    %v854 = vld [vmem:[%s3 + $0x148] sm:$0xff]
    %v855 = vld [vmem:[%s3 + $0x150] sm:$0xff]
    %v856 = vld [vmem:[%s3 + $0x158] sm:$0xff]
    %v857 = vld [vmem:[%s3 + $0x160] sm:$0xff]
    %v858 = vld [vmem:[%s3 + $0x168] sm:$0xff]
    %v859 = vld [vmem:[%s3 + $0x170] sm:$0xff]
    %v860 = vld [vmem:[%s3 + $0x178] sm:$0xff]
    %862 = vset.pattern.permute.xlu0 0
    %863 = vperm.xlu0 %862, %v813
    %v864 = vpop.permute.xlu0 %863
    %867 = vset.pattern.permute.xlu0 0
    %868 = vperm.xlu0 %867, %v814
    %v869 = vpop.permute.xlu0 %868
    %872 = vset.pattern.permute.xlu0 0
    %873 = vperm.xlu0 %872, %v815
    %v874 = vpop.permute.xlu0 %873
    %877 = vset.pattern.permute.xlu0 0
    %878 = vperm.xlu0 %877, %v816
    %v879 = vpop.permute.xlu0 %878
    %882 = vset.pattern.permute.xlu0 0
    %883 = vperm.xlu0 %882, %v817
    %v884 = vpop.permute.xlu0 %883
    %887 = vset.pattern.permute.xlu0 0
    %888 = vperm.xlu0 %887, %v818
    %v889 = vpop.permute.xlu0 %888
    %892 = vset.pattern.permute.xlu0 0
    %893 = vperm.xlu0 %892, %v819
    %v894 = vpop.permute.xlu0 %893
    %897 = vset.pattern.permute.xlu0 0
    %898 = vperm.xlu0 %897, %v820
    %v899 = vpop.permute.xlu0 %898
    %902 = vset.pattern.permute.xlu0 0
    %903 = vperm.xlu0 %902, %v821
    %v904 = vpop.permute.xlu0 %903
    %907 = vset.pattern.permute.xlu0 0
    %908 = vperm.xlu0 %907, %v822
    %v909 = vpop.permute.xlu0 %908
    %912 = vset.pattern.permute.xlu0 0
    %913 = vperm.xlu0 %912, %v823
    %v914 = vpop.permute.xlu0 %913
    %917 = vset.pattern.permute.xlu0 0
    %918 = vperm.xlu0 %917, %v824
    %v919 = vpop.permute.xlu0 %918
    %922 = vset.pattern.permute.xlu0 0
    %923 = vperm.xlu0 %922, %v825
    %v924 = vpop.permute.xlu0 %923
    %927 = vset.pattern.permute.xlu0 0
    %928 = vperm.xlu0 %927, %v826
    %v929 = vpop.permute.xlu0 %928
    %932 = vset.pattern.permute.xlu0 0
    %933 = vperm.xlu0 %932, %v827
    %v934 = vpop.permute.xlu0 %933
    %937 = vset.pattern.permute.xlu0 0
    %938 = vperm.xlu0 %937, %v828
    %v939 = vpop.permute.xlu0 %938
    %942 = vset.pattern.permute.xlu0 0
    %943 = vperm.xlu0 %942, %v829
    %v944 = vpop.permute.xlu0 %943
    %947 = vset.pattern.permute.xlu0 0
    %948 = vperm.xlu0 %947, %v830
    %v949 = vpop.permute.xlu0 %948
    %952 = vset.pattern.permute.xlu0 0
    %953 = vperm.xlu0 %952, %v831
    %v954 = vpop.permute.xlu0 %953
    %957 = vset.pattern.permute.xlu0 0
    %958 = vperm.xlu0 %957, %v832
    %v959 = vpop.permute.xlu0 %958
    %962 = vset.pattern.permute.xlu0 0
    %963 = vperm.xlu0 %962, %v833
    %v964 = vpop.permute.xlu0 %963
    %967 = vset.pattern.permute.xlu0 0
    %968 = vperm.xlu0 %967, %v834
    %v969 = vpop.permute.xlu0 %968
    %972 = vset.pattern.permute.xlu0 0
    %973 = vperm.xlu0 %972, %v835
    %v974 = vpop.permute.xlu0 %973
    %977 = vset.pattern.permute.xlu0 0
    %978 = vperm.xlu0 %977, %v836
    %v979 = vpop.permute.xlu0 %978
    %982 = vset.pattern.permute.xlu0 0
    %983 = vperm.xlu0 %982, %v837
    %v984 = vpop.permute.xlu0 %983
    %987 = vset.pattern.permute.xlu0 0
    %988 = vperm.xlu0 %987, %v838
    %v989 = vpop.permute.xlu0 %988
    %992 = vset.pattern.permute.xlu0 0
    %993 = vperm.xlu0 %992, %v839
    %v994 = vpop.permute.xlu0 %993
    %997 = vset.pattern.permute.xlu0 0
    %998 = vperm.xlu0 %997, %v840
    %v999 = vpop.permute.xlu0 %998
    %1002 = vset.pattern.permute.xlu0 0
    %1003 = vperm.xlu0 %1002, %v841
    %v1004 = vpop.permute.xlu0 %1003
    %1007 = vset.pattern.permute.xlu0 0
    %1008 = vperm.xlu0 %1007, %v842
    %v1009 = vpop.permute.xlu0 %1008
    %1012 = vset.pattern.permute.xlu0 0
    %1013 = vperm.xlu0 %1012, %v843
    %v1014 = vpop.permute.xlu0 %1013
    %1017 = vset.pattern.permute.xlu0 0
    %1018 = vperm.xlu0 %1017, %v844
    %v1019 = vpop.permute.xlu0 %1018
    %1022 = vset.pattern.permute.xlu0 0
    %1023 = vperm.xlu0 %1022, %v845
    %v1024 = vpop.permute.xlu0 %1023
    %1027 = vset.pattern.permute.xlu0 0
    %1028 = vperm.xlu0 %1027, %v846
    %v1029 = vpop.permute.xlu0 %1028
    %1032 = vset.pattern.permute.xlu0 0
    %1033 = vperm.xlu0 %1032, %v847
    %v1034 = vpop.permute.xlu0 %1033
    %1037 = vset.pattern.permute.xlu0 0
    %1038 = vperm.xlu0 %1037, %v848
    %v1039 = vpop.permute.xlu0 %1038
    %1042 = vset.pattern.permute.xlu0 0
    %1043 = vperm.xlu0 %1042, %v849
    %v1044 = vpop.permute.xlu0 %1043
    %1047 = vset.pattern.permute.xlu0 0
    %1048 = vperm.xlu0 %1047, %v850
    %v1049 = vpop.permute.xlu0 %1048
    %1052 = vset.pattern.permute.xlu0 0
    %1053 = vperm.xlu0 %1052, %v851
    %v1054 = vpop.permute.xlu0 %1053
    %1057 = vset.pattern.permute.xlu0 0
    %1058 = vperm.xlu0 %1057, %v852
    %v1059 = vpop.permute.xlu0 %1058
    %1062 = vset.pattern.permute.xlu0 0
    %1063 = vperm.xlu0 %1062, %v853
    %v1064 = vpop.permute.xlu0 %1063
    %1067 = vset.pattern.permute.xlu0 0
    %1068 = vperm.xlu0 %1067, %v854
    %v1069 = vpop.permute.xlu0 %1068
    %1072 = vset.pattern.permute.xlu0 0
    %1073 = vperm.xlu0 %1072, %v855
    %v1074 = vpop.permute.xlu0 %1073
    %1077 = vset.pattern.permute.xlu0 0
    %1078 = vperm.xlu0 %1077, %v856
    %v1079 = vpop.permute.xlu0 %1078
    %1082 = vset.pattern.permute.xlu0 0
    %1083 = vperm.xlu0 %1082, %v857
    %v1084 = vpop.permute.xlu0 %1083
    %1087 = vset.pattern.permute.xlu0 0
    %1088 = vperm.xlu0 %1087, %v858
    %v1089 = vpop.permute.xlu0 %1088
    %1092 = vset.pattern.permute.xlu0 0
    %1093 = vperm.xlu0 %1092, %v859
    %v1094 = vpop.permute.xlu0 %1093
    %1097 = vset.pattern.permute.xlu0 0
    %1098 = vperm.xlu0 %1097, %v860
    %v1099 = vpop.permute.xlu0 %1098
    %v1101 = vmul.f32 %v575, %v864
    %v1102 = vmul.f32 %v580, %v869
    %v1103 = vmul.f32 %v585, %v874
    %v1104 = vmul.f32 %v590, %v879
    %v1105 = vmul.f32 %v595, %v884
    %v1106 = vmul.f32 %v600, %v889
    %v1107 = vmul.f32 %v605, %v894
    %v1108 = vmul.f32 %v610, %v899
    %v1109 = vmul.f32 %v615, %v904
    %v1110 = vmul.f32 %v620, %v909
    %v1111 = vmul.f32 %v625, %v914
    %v1112 = vmul.f32 %v630, %v919
    %v1113 = vmul.f32 %v635, %v924
    %v1114 = vmul.f32 %v640, %v929
    %v1115 = vmul.f32 %v645, %v934
    %v1116 = vmul.f32 %v650, %v939
    %v1117 = vmul.f32 %v655, %v944
    %v1118 = vmul.f32 %v660, %v949
    %v1119 = vmul.f32 %v665, %v954
    %v1120 = vmul.f32 %v670, %v959
    %v1121 = vmul.f32 %v675, %v964
    %v1122 = vmul.f32 %v680, %v969
    %v1123 = vmul.f32 %v685, %v974
    %v1124 = vmul.f32 %v690, %v979
    %v1125 = vmul.f32 %v695, %v984
    %v1126 = vmul.f32 %v700, %v989
    %v1127 = vmul.f32 %v705, %v994
    %v1128 = vmul.f32 %v710, %v999
    %v1129 = vmul.f32 %v715, %v1004
    %v1130 = vmul.f32 %v720, %v1009
    %v1131 = vmul.f32 %v725, %v1014
    %v1132 = vmul.f32 %v730, %v1019
    %v1133 = vmul.f32 %v735, %v1024
    %v1134 = vmul.f32 %v740, %v1029
    %v1135 = vmul.f32 %v745, %v1034
    %v1136 = vmul.f32 %v750, %v1039
    %v1137 = vmul.f32 %v755, %v1044
    %v1138 = vmul.f32 %v760, %v1049
    %v1139 = vmul.f32 %v765, %v1054
    %v1140 = vmul.f32 %v770, %v1059
    %v1141 = vmul.f32 %v775, %v1064
    %v1142 = vmul.f32 %v780, %v1069
    %v1143 = vmul.f32 %v785, %v1074
    %v1144 = vmul.f32 %v790, %v1079
    %v1145 = vmul.f32 %v795, %v1084
    %v1146 = vmul.f32 %v800, %v1089
    %v1147 = vmul.f32 %v805, %v1094
    %v1148 = vmul.f32 %v810, %v1099
    %v1149 = vadd.f32 %v1101, %v1102
    %v1150 = vadd.f32 %v1149, %v1103
    %v1151 = vadd.f32 %v1150, %v1104
    %v1152 = vadd.f32 %v1151, %v1105
    %v1153 = vadd.f32 %v1152, %v1106
    %v1154 = vadd.f32 %v1153, %v1107
    %v1155 = vadd.f32 %v1154, %v1108
    %v1156 = vadd.f32 %v1155, %v1109
    %v1157 = vadd.f32 %v1156, %v1110
    %v1158 = vadd.f32 %v1157, %v1111
    %v1159 = vadd.f32 %v1158, %v1112
    %v1160 = vadd.f32 %v1159, %v1113
    %v1161 = vadd.f32 %v1160, %v1114
    %v1162 = vadd.f32 %v1161, %v1115
    %v1163 = vadd.f32 %v1162, %v1116
    %v1164 = vadd.f32 %v1163, %v1117
    %v1165 = vadd.f32 %v1164, %v1118
    %v1166 = vadd.f32 %v1165, %v1119
    %v1167 = vadd.f32 %v1166, %v1120
    %v1168 = vadd.f32 %v1167, %v1121
    %v1169 = vadd.f32 %v1168, %v1122
    %v1170 = vadd.f32 %v1169, %v1123
    %v1171 = vadd.f32 %v1170, %v1124
    %v1172 = vadd.f32 %v1171, %v1125
    %v1173 = vadd.f32 %v1172, %v1126
    %v1174 = vadd.f32 %v1173, %v1127
    %v1175 = vadd.f32 %v1174, %v1128
    %v1176 = vadd.f32 %v1175, %v1129
    %v1177 = vadd.f32 %v1176, %v1130
    %v1178 = vadd.f32 %v1177, %v1131
    %v1179 = vadd.f32 %v1178, %v1132
    %v1180 = vadd.f32 %v1179, %v1133
    %v1181 = vadd.f32 %v1180, %v1134
    %v1182 = vadd.f32 %v1181, %v1135
    %v1183 = vadd.f32 %v1182, %v1136
    %v1184 = vadd.f32 %v1183, %v1137
    %v1185 = vadd.f32 %v1184, %v1138
    %v1186 = vadd.f32 %v1185, %v1139
    %v1187 = vadd.f32 %v1186, %v1140
    %v1188 = vadd.f32 %v1187, %v1141
    %v1189 = vadd.f32 %v1188, %v1142
    %v1190 = vadd.f32 %v1189, %v1143
    %v1191 = vadd.f32 %v1190, %v1144
    %v1192 = vadd.f32 %v1191, %v1145
    %v1193 = vadd.f32 %v1192, %v1146
    %v1194 = vadd.f32 %v1193, %v1147
    %v1195 = vadd.f32 %v1194, %v1148
    %v1196 = vrot.slane %v1195, 4
    %v1197 = vadd.f32 %v1195, %v1196
    %v1198 = vrot.slane %v1197, 2
    %v1199 = vadd.f32 %v1197, %v1198
    %v1200 = vrot.slane %v1199, 1
    %v1201 = vadd.f32 %v1199, %v1200
    %v1202 = vld [vmem:[#allocation2] sm:$0x1]
    %1204 = vset.pattern.permute.xlu0 0
    %1205 = vperm.xlu0 %1204, %v1202
    %v1206 = vpop.permute.xlu0 %1205
    %v1208 = vlaneseq
    %v1209 = vshrl.u32 %v1208, 7
    %v1210 = vsub.s32 0, %v1209
    %v1211 = vrot.slane %v1206, %v1210
    %v1212 = vadd.f32 %v1201, %v1211
    %1213 = vst [vmem:[#allocation3] sm:$0xff] %v1212
    // Predicated region
    $region22: #{tpu_custom_call.1} parent=1 // pred_check
      _
    $region23: #{tpu_custom_call.1} parent=1 // pred_check_branch
      %1215 = sbr.rel (0) target = $region25
    $region24: #{tpu_custom_call.1} parent=1 // pred_region
      %s1217 = ssub.s32 128, 128
      %1218 = vsyncadd [#allocation4], %s1217
      %s1220 = sshll.u32 [#allocation3], 4
      %s1221 = int_to_ptr.vmem [resolvable:$true] %s1220
      %1223 = dma.vmem_to_hbm [thread:$0]  %s1221, 128, %s5, [#allocation4]
    $region25: #{tpu_custom_call.1} parent=1 // pred_fallthru
      _
    // Predicated region
    $region26: #{tpu_custom_call.1} parent=1 // pred_check
      _
    $region27: #{tpu_custom_call.1} parent=1 // pred_check_branch
      %1225 = sbr.rel (0) target = $region29
    $region28: #{tpu_custom_call.1} parent=1 // pred_region
      %1226 = dma.done [#allocation4], 128
    $region29: #{tpu_custom_call.1} parent=1 // pred_fallthru
      _
    %1227 = vsyncpa [#allocation4], 1

</llo_original>
